<compile_context>
chip_gen: v6e
topology: v6e:2x2x1
jax: 0.10.0
libtpu: 0.0.40
codegen_flags: <defaults>
</compile_context>

<pallas_src>
import jax
import jax.numpy as jnp
from jax import lax
from jax.experimental import pallas as pl
from jax.experimental.pallas import tpu as pltpu

_EPS = 1e-5


# --------------------------------------------------------------------------
# Kernels.  x tiles are (C, LT); weights (C, C); per-channel vectors (C, 1).
# --------------------------------------------------------------------------
def _stats1_kernel(x_ref, w1_ref, sum_ref, sq_ref):
    """Per-N partial sum / sum-of-squares of y1 = W1 @ x (accumulated over L)."""
    @pl.when(pl.program_id(1) == 0)
    def _():
        sum_ref[...] = jnp.zeros_like(sum_ref)
        sq_ref[...] = jnp.zeros_like(sq_ref)

    y1 = jnp.dot(w1_ref[...], x_ref[...], preferred_element_type=jnp.float32)
    sum_ref[...] += jnp.sum(y1, axis=1, keepdims=True)
    sq_ref[...] += jnp.sum(y1 * y1, axis=1, keepdims=True)


def _stats2_kernel(x_ref, w1f_ref, t1_ref, w2_ref, sum_ref, sq_ref):
    """Per-N partial stats of y2 = W2 @ relu(W1f @ x + t1) (BN1 pre-folded)."""
    @pl.when(pl.program_id(1) == 0)
    def _():
        sum_ref[...] = jnp.zeros_like(sum_ref)
        sq_ref[...] = jnp.zeros_like(sq_ref)

    y1 = jnp.dot(w1f_ref[...], x_ref[...], preferred_element_type=jnp.float32)
    h = jnp.maximum(y1 + t1_ref[...], 0.0)
    y2 = jnp.dot(w2_ref[...], h.astype(w2_ref.dtype),
                 preferred_element_type=jnp.float32)
    sum_ref[...] += jnp.sum(y2, axis=1, keepdims=True)
    sq_ref[...] += jnp.sum(y2 * y2, axis=1, keepdims=True)


def _final_kernel(x_ref, w1f_ref, t1_ref, w2f_ref, t2_ref, o_ref):
    """out = relu(W2f @ relu(W1f @ x + t1) + t2 + x); BN folded into W*, t*."""
    x = x_ref[...]
    y1 = jnp.dot(w1f_ref[...], x, preferred_element_type=jnp.float32)
    h = jnp.maximum(y1 + t1_ref[...], 0.0)
    y2 = jnp.dot(w2f_ref[...], h.astype(w2f_ref.dtype),
                 preferred_element_type=jnp.float32)
    o_ref[...] = jnp.maximum(y2 + t2_ref[...] + x.astype(jnp.float32), 0.0)


# --------------------------------------------------------------------------
# Generation-aware VMEM budget and tile sizing.
# --------------------------------------------------------------------------
def _vmem_limit_bytes():
    mib = 1024 * 1024
    try:
        phys = pltpu.get_tpu_info().vmem_capacity_bytes
    except Exception:
        phys = 64 * mib  # conservative (v7x-sized) fallback
    if phys >= 128 * mib:      # v5e / v6e
        return 96 * mib
    return 48 * mib            # v7x (64 MiB physical)


def _pick_l_tile(l, c, act_bytes, vmem_limit):
    """Largest L tile that fits the VMEM budget (prefer multiples of 128)."""
    weights = 2 * 2 * c * c * act_bytes              # W1 + W2, double-buffered worst case
    budget = int(vmem_limit * 0.75) - weights
    # per unit of LT: x tile (2 bufs) + out tile (2 bufs, f32) + ~3 f32 temps
    per_lt = c * (2 * act_bytes + 2 * 4 + 3 * 4)
    lt_max = max(128, budget // max(per_lt, 1))
    if l <= lt_max:
        return l
    cand = (min(lt_max, l) // 128) * 128
    while cand >= 128:
        if l % cand == 0:
            return cand
        cand -= 128
    for d in range(min(lt_max, l), 0, -1):
        if l % d == 0:
            return d
    return l


# --------------------------------------------------------------------------
# Wrapper.
# --------------------------------------------------------------------------
def residual_forward(x_ncl, params, *, compute_dtype=None, l_tile=None):
    """x_ncl: (N, C, L) float32.  Returns (N, C, L) float32."""
    n, c, l = x_ncl.shape
    if compute_dtype is None:
        # bf16 operands pay off (traffic + MXU rate) at production channel
        # counts; keep exact f32 for small C.
        compute_dtype = jnp.bfloat16 if c >= 128 else jnp.float32
    act_bytes = jnp.dtype(compute_dtype).itemsize
    vmem_limit = _vmem_limit_bytes()
    lt = l_tile if l_tile is not None else _pick_l_tile(l, c, act_bytes, vmem_limit)
    assert l % lt == 0, (l, lt)
    grid = (n, l // lt)
    m = float(n * l)

    x_c = x_ncl.astype(compute_dtype)
    w1 = params["w1"].astype(jnp.float32)   # (C_out, C_in) == conv weight squeezed
    w2 = params["w2"].astype(jnp.float32)
    g1 = params["g1"].reshape(c, 1)
    be1 = params["be1"].reshape(c, 1)
    g2 = params["g2"].reshape(c, 1)
    be2 = params["be2"].reshape(c, 1)
    # NOTE: conv biases b1/b2 are exact no-ops under training-mode BatchNorm
    # (batch-mean subtraction cancels any constant per-channel shift).

    x_spec = pl.BlockSpec((None, c, lt), lambda i, j: (i, 0, j))    # N squeezed
    out_spec = pl.BlockSpec((None, c, lt), lambda i, j: (i, 0, j))

    def resident(shape):
        idx = lambda i, j, _r=len(shape): (0,) * _r
        if c >= 256:
            # Grid-invariant operands: single-buffer to save VMEM at large C.
            return pl.BlockSpec(shape, idx, pipeline_mode=pl.Buffered(1))
        return pl.BlockSpec(shape, idx)

    # Per-N partial accumulators -> N axis can be "parallel" without racing.
    acc_spec = pl.BlockSpec((None, c, 1), lambda i, j: (i, 0, 0))
    acc_shape = jax.ShapeDtypeStruct((n, c, 1), jnp.float32)

    stats_cp = pltpu.CompilerParams(
        dimension_semantics=("parallel", "arbitrary"),
        vmem_limit_bytes=vmem_limit)
    final_cp = pltpu.CompilerParams(
        dimension_semantics=("parallel", "parallel"),
        vmem_limit_bytes=vmem_limit)

    # ---- pass 1: global batch stats of y1 = W1 @ x ----
    sum1, sq1 = pl.pallas_call(
        _stats1_kernel,
        grid=grid,
        in_specs=[x_spec, resident((c, c))],
        out_specs=[acc_spec, acc_spec],
        out_shape=[acc_shape, acc_shape],
        compiler_params=stats_cp,
    )(x_c, w1.astype(compute_dtype))
    mean1 = jnp.sum(sum1, axis=0) / m                       # (C, 1)
    var1 = jnp.maximum(jnp.sum(sq1, axis=0) / m - mean1 * mean1, 0.0)
    s1 = g1 * lax.rsqrt(var1 + _EPS)
    t1 = be1 - mean1 * s1                                   # f32 shift
    w1f = (w1 * s1).astype(compute_dtype)                   # fold BN1 scale into W1 rows

    # ---- pass 2: global batch stats of y2 = W2 @ relu(bn1(y1)) ----
    sum2, sq2 = pl.pallas_call(
        _stats2_kernel,
        grid=grid,
        in_specs=[x_spec, resident((c, c)), resident((c, 1)), resident((c, c))],
        out_specs=[acc_spec, acc_spec],
        out_shape=[acc_shape, acc_shape],
        compiler_params=stats_cp,
    )(x_c, w1f, t1, w2.astype(compute_dtype))
    mean2 = jnp.sum(sum2, axis=0) / m
    var2 = jnp.maximum(jnp.sum(sq2, axis=0) / m - mean2 * mean2, 0.0)
    s2 = g2 * lax.rsqrt(var2 + _EPS)
    t2 = be2 - mean2 * s2
    w2f = (w2 * s2).astype(compute_dtype)                   # fold BN2 scale into W2 rows

    # ---- pass 3: fused conv+BN+relu + residual + relu (NCL layout preserved) ----
    out = pl.pallas_call(
        _final_kernel,
        grid=grid,
        in_specs=[x_spec, resident((c, c)), resident((c, 1)),
                  resident((c, c)), resident((c, 1))],
        out_specs=out_spec,
        out_shape=jax.ShapeDtypeStruct((n, c, l), jnp.float32),
        compiler_params=final_cp,
    )(x_c, w1f, t1, w2f, t2)
    return out


# --------------------------------------------------------------------------
# Parameter init (matches torch module's parameter shapes / defaults).
# --------------------------------------------------------------------------
def init_params(key, n_input, n_output):
    ks = jax.random.split(key, 4)
    bound1 = 1.0 / jnp.sqrt(n_input)
    bound2 = 1.0 / jnp.sqrt(n_output)
    w1 = jax.random.uniform(ks[0], (n_output, n_input), jnp.float32, -bound1, bound1)
    b1 = jax.random.uniform(ks[1], (n_output,), jnp.float32, -bound1, bound1)
    w2 = jax.random.uniform(ks[2], (n_output, n_output), jnp.float32, -bound2, bound2)
    b2 = jax.random.uniform(ks[3], (n_output,), jnp.float32, -bound2, bound2)
    g1 = jnp.ones((n_output,), jnp.float32)
    be1 = jnp.zeros((n_output,), jnp.float32)
    g2 = jnp.ones((n_output,), jnp.float32)
    be2 = jnp.zeros((n_output,), jnp.float32)
    return dict(w1=w1, b1=b1, g1=g1, be1=be1, w2=w2, b2=b2, g2=g2, be2=be2)


# --------------------------------------------------------------------------
# Pure-JAX reference (matches torch forward exactly, biases included).
# --------------------------------------------------------------------------
def _reference(x_ncl, p):
    n, c, l = x_ncl.shape
    xf = jnp.transpose(x_ncl, (0, 2, 1)).reshape(n * l, c)

    def bn(y, g, be):
        mu = jnp.mean(y, axis=0, keepdims=True)
        var = jnp.mean((y - mu) ** 2, axis=0, keepdims=True)
        return (y - mu) * lax.rsqrt(var + _EPS) * g + be

    y = xf @ p["w1"].T + p["b1"]
    y = jnp.maximum(bn(y, p["g1"], p["be1"]), 0.0)
    y = y @ p["w2"].T + p["b2"]
    y = bn(y, p["g2"], p["be2"])
    y = jnp.maximum(y + xf, 0.0)
    return jnp.transpose(y.reshape(n, l, c), (0, 2, 1))


if __name__ == "__main__":
    N, C, L = 2, 8, 256   # n_input = n_output = 8
    key = jax.random.PRNGKey(0)
    kx, kp = jax.random.split(key)
    x = jax.random.normal(kx, (N, C, L), dtype=jnp.float32)
    params = init_params(kp, C, C)
    ref = _reference(x, params)

    # (a) default path (auto tile, f32 compute at this C): tight tolerance.
    out = jax.block_until_ready(residual_forward(x, params))
    assert out.shape == (N, C, L) and out.dtype == jnp.float32
    err = float(jnp.max(jnp.abs(out - ref)))
    assert jnp.allclose(out, ref, atol=1e-4, rtol=1e-4), err

    # (b) forced smaller L tile: exercises multi-step stats accumulation along
    #     the "arbitrary" axis and the per-N partial reduction.
    out_t = jax.block_until_ready(residual_forward(x, params, l_tile=128))
    assert jnp.allclose(out_t, ref, atol=1e-4, rtol=1e-4), \
        float(jnp.max(jnp.abs(out_t - ref)))

    # (c) bf16 operand path (production config for C >= 128): loose tolerance,
    #     f32 accumulation / BN / residual preserved.
    out_bf = jax.block_until_ready(
        residual_forward(x, params, compute_dtype=jnp.bfloat16))
    assert jnp.allclose(out_bf, ref, atol=2e-1, rtol=2e-1), \
        float(jnp.max(jnp.abs(out_bf - ref)))

    print("KERNEL_OK")
</pallas_src>

<mosaic_0001>
module attributes {stable_mosaic.version = 11 : i64} {
  func.func @_stats1_kernel(%arg0: i32, %arg1: i32, %arg2: memref<1x8x256xf32, #tpu.memory_space<vmem>>, %arg3: memref<8x8xf32, #tpu.memory_space<vmem>>, %arg4: memref<1x8x1xf32, #tpu.memory_space<vmem>>, %arg5: memref<1x8x1xf32, #tpu.memory_space<vmem>>) attributes {dimension_semantics = [#tpu.dimension_semantics<parallel>, #tpu.dimension_semantics<arbitrary>], iteration_bounds = array<i64: 2, 1>, scalar_prefetch = 0 : i64, scratch_operands = 0 : i64, tpu.core_type = #tpu.core_type<tc>, window_params = [{transform_indices = @transform_0, window_bounds = array<i64: 1, 8, 256>}, {pipeline_mode = #tpu.pipeline_mode<synchronous>, transform_indices = @transform_1, window_bounds = array<i64: 8, 8>}, {transform_indices = @transform_2, window_bounds = array<i64: 1, 8, 1>}, {transform_indices = @transform_3, window_bounds = array<i64: 1, 8, 1>}]} {
    %c0_i32 = arith.constant 0 : i32
    %0 = arith.cmpi eq, %arg1, %c0_i32 : i32
    %1 = arith.extui %0 : i1 to i32
    %c0_i32_0 = arith.constant 0 : i32
    %2 = arith.cmpi ne, %1, %c0_i32_0 : i32
    scf.if %2 {
      %cst_19 = arith.constant 0.000000e+00 : f32
      %24 = vector.broadcast %cst_19 : f32 to vector<8x1xf32>
      %c0_20 = arith.constant 0 : index
      %c0_21 = arith.constant 0 : index
      %c0_22 = arith.constant 0 : index
      %25 = vector.load %arg4[%c0_20, %c0_21, %c0_22] : memref<1x8x1xf32, #tpu.memory_space<vmem>>, vector<1x8x1xf32>
      %26 = vector.shape_cast %25 : vector<1x8x1xf32> to vector<8x1xf32>
      %27 = vector.shape_cast %24 : vector<8x1xf32> to vector<1x8x1xf32>
      tpu.vector_store %arg4[%c0_20, %c0_21, %c0_22], %27 {strides = array<i32>} : memref<1x8x1xf32, #tpu.memory_space<vmem>>, vector<1x8x1xf32>,
      %cst_23 = arith.constant 0.000000e+00 : f32
      %28 = vector.broadcast %cst_23 : f32 to vector<8x1xf32>
      %c0_24 = arith.constant 0 : index
      %c0_25 = arith.constant 0 : index
      %c0_26 = arith.constant 0 : index
      %29 = vector.load %arg5[%c0_24, %c0_25, %c0_26] : memref<1x8x1xf32, #tpu.memory_space<vmem>>, vector<1x8x1xf32>
      %30 = vector.shape_cast %29 : vector<1x8x1xf32> to vector<8x1xf32>
      %31 = vector.shape_cast %28 : vector<8x1xf32> to vector<1x8x1xf32>
      tpu.vector_store %arg5[%c0_24, %c0_25, %c0_26], %31 {strides = array<i32>} : memref<1x8x1xf32, #tpu.memory_space<vmem>>, vector<1x8x1xf32>,
    } else {
    }
    %c0 = arith.constant 0 : index
    %c0_1 = arith.constant 0 : index
    %3 = vector.load %arg3[%c0, %c0_1] : memref<8x8xf32, #tpu.memory_space<vmem>>, vector<8x8xf32>
    %c0_2 = arith.constant 0 : index
    %c0_3 = arith.constant 0 : index
    %c0_4 = arith.constant 0 : index
    %4 = vector.load %arg2[%c0_2, %c0_3, %c0_4] : memref<1x8x256xf32, #tpu.memory_space<vmem>>, vector<1x8x256xf32>
    %5 = vector.shape_cast %4 : vector<1x8x256xf32> to vector<8x256xf32>
    %cst = arith.constant dense<0.000000e+00> : vector<8x256xf32>
    %6 = tpu.matmul %3, %5, %cst {dimension_numbers = #tpu.dot_dimension_numbers<[1], [0], [0], [1], [0, 0, 1, 1], [], []>} : vector<8x8xf32>, vector<8x256xf32>, vector<8x256xf32> -> vector<8x256xf32>
    %c0_5 = arith.constant 0 : index
    %c0_6 = arith.constant 0 : index
    %c0_7 = arith.constant 0 : index
    %7 = vector.load %arg4[%c0_5, %c0_6, %c0_7] : memref<1x8x1xf32, #tpu.memory_space<vmem>>, vector<1x8x1xf32>
    %8 = vector.shape_cast %7 : vector<1x8x1xf32> to vector<8x1xf32>
    %cst_8 = arith.constant dense<0.000000e+00> : vector<8xf32>
    %9 = vector.multi_reduction <add>, %6, %cst_8 [1] : vector<8x256xf32> to vector<8xf32>
    %10 = vector.shape_cast %9 : vector<8xf32> to vector<8x1xf32>
    %11 = arith.addf %8, %10 : vector<8x1xf32>
    %c0_9 = arith.constant 0 : index
    %c0_10 = arith.constant 0 : index
    %c0_11 = arith.constant 0 : index
    %12 = vector.load %arg4[%c0_9, %c0_10, %c0_11] : memref<1x8x1xf32, #tpu.memory_space<vmem>>, vector<1x8x1xf32>
    %13 = vector.shape_cast %12 : vector<1x8x1xf32> to vector<8x1xf32>
    %14 = vector.shape_cast %11 : vector<8x1xf32> to vector<1x8x1xf32>
    tpu.vector_store %arg4[%c0_9, %c0_10, %c0_11], %14 {strides = array<i32>} : memref<1x8x1xf32, #tpu.memory_space<vmem>>, vector<1x8x1xf32>,
    %c0_12 = arith.constant 0 : index
    %c0_13 = arith.constant 0 : index
    %c0_14 = arith.constant 0 : index
    %15 = vector.load %arg5[%c0_12, %c0_13, %c0_14] : memref<1x8x1xf32, #tpu.memory_space<vmem>>, vector<1x8x1xf32>
    %16 = vector.shape_cast %15 : vector<1x8x1xf32> to vector<8x1xf32>
    %17 = arith.mulf %6, %6 : vector<8x256xf32>
    %cst_15 = arith.constant dense<0.000000e+00> : vector<8xf32>
    %18 = vector.multi_reduction <add>, %17, %cst_15 [1] : vector<8x256xf32> to vector<8xf32>
    %19 = vector.shape_cast %18 : vector<8xf32> to vector<8x1xf32>
    %20 = arith.addf %16, %19 : vector<8x1xf32>
    %c0_16 = arith.constant 0 : index
    %c0_17 = arith.constant 0 : index
    %c0_18 = arith.constant 0 : index
    %21 = vector.load %arg5[%c0_16, %c0_17, %c0_18] : memref<1x8x1xf32, #tpu.memory_space<vmem>>, vector<1x8x1xf32>
    %22 = vector.shape_cast %21 : vector<1x8x1xf32> to vector<8x1xf32>
    %23 = vector.shape_cast %20 : vector<8x1xf32> to vector<1x8x1xf32>
    tpu.vector_store %arg5[%c0_16, %c0_17, %c0_18], %23 {strides = array<i32>} : memref<1x8x1xf32, #tpu.memory_space<vmem>>, vector<1x8x1xf32>,
    return
  }
  func.func @transform_0(%arg0: i32, %arg1: i32) -> (i32, i32, i32) {
    %c0_i32 = arith.constant 0 : i32
    %c0_i32_0 = arith.constant 0 : i32
    return %arg0, %c0_i32, %arg1 : i32, i32, i32
  }
  func.func @transform_1(%arg0: i32, %arg1: i32) -> (i32, i32) {
    %c0_i32 = arith.constant 0 : i32
    %c0_i32_0 = arith.constant 0 : i32
    %c0_i32_1 = arith.constant 0 : i32
    return %c0_i32, %c0_i32_0 : i32, i32
  }
  func.func @transform_2(%arg0: i32, %arg1: i32) -> (i32, i32, i32) {
    %c0_i32 = arith.constant 0 : i32
    %c0_i32_0 = arith.constant 0 : i32
    %c0_i32_1 = arith.constant 0 : i32
    return %arg0, %c0_i32, %c0_i32_0 : i32, i32, i32
  }
  func.func @transform_3(%arg0: i32, %arg1: i32) -> (i32, i32, i32) {
    %c0_i32 = arith.constant 0 : i32
    %c0_i32_0 = arith.constant 0 : i32
    %c0_i32_1 = arith.constant 0 : i32
    return %arg0, %c0_i32, %c0_i32_0 : i32, i32, i32
  }
}

</mosaic_0001>

<llo_original>
// kernel: tpu_custom_call.1
$region0: #{tpu_custom_call.1}
  #allocation0 [shape = 'u32[]', space=smem, size = 0x4, offset = 0x4, fixed_abs, tag = 'smem constant byte address 0x4 - core index']
  #allocation1 [shape = 'u32[144,128]{1,0:T(1,128)}', space=vmem, size = 0x12000, scoped, tag = 'internal scratch']
  %s0 = inlined_call_operand.hbm [shape: f32[2,8,256], index: 0, kind: input, shape index: {}]
  %s1 = inlined_call_operand.hbm [shape: f32[8,8], index: 1, kind: input, shape index: {}]
  %s2 = inlined_call_operand.vmem [shape: f32[2,8,1], index: 2, kind: output, shape index: {0}]
  %s3 = inlined_call_operand.vmem [shape: f32[2,8,1], index: 3, kind: output, shape index: {1}]
  %4 = xla_tuple %s2, %s3
  %s5 = sld [smem:[#allocation0]]
  $region61: #{tpu_custom_call.1} parent=0
    _
  %s7 = ssub.s32 1, %s5
  %s8 = scalar_select 0, %s7, %s5
  $region1: #{tpu_custom_call.1} parent=0
    #allocation2 [shape = 'u8[16384]{0}', space=vmem, size = 0x4000, scoped, tag = 'input window, operand 0']
    #allocation3 [shape = 's32[2]{0}', space=sflag, size = 0x8, scoped, tag = 'scoped memory for tpu_custom_call.1']
    #allocation4 [shape = 'u8[4096]{0}', space=vmem, size = 0x1000, scoped, tag = 'input window, operand 1, single buffered']
    #allocation5 [shape = 's32[1]{0}', space=sflag, size = 0x4, scoped, tag = 'scoped memory for tpu_custom_call.1']
    %9 = vsyncpa [#allocation3], 0
    %s10 = scalar_lea.sflag [#allocation3], 1
    %11 = vsyncpa %s10, 0
    %12 = vsyncpa [#allocation5], 0
    loop: start=0, step=1, limit=4
    $region2: #{tpu_custom_call.1} parent=1 // loop_pre_header
      _
    $region3: #{tpu_custom_call.1} parent=1 // loop_header
      %s14 = sphi 0, %s18
      %p15 = scmp.ge.s32.totalorder %s14, 4
      %s21 = sphi 0, %s33
      %s22 = sphi 0, %s29
      %s23 = sphi 0, %s21
      %s24 = sphi 0, %s22
      %s25 = sphi 0, %s23
      %s26 = sphi 0, %s24
      %s38 = sphi 0, %s40
      %s41 = sphi 0, %s38
      %s42 = sphi 0, %s41
      %s58 = sphi 0, %s42
      %s62 = sphi 0, %s62
      %s64 = sphi 0, %s62
      %s65 = sphi 0, %s64
      %s79 = sphi 0, %s65
      %s85 = sphi 0, %s87
      %s88 = sphi 0, %s85
      %s89 = sphi 0, %s88
      %s105 = sphi 0, %s89
      %s111 = sphi 0, %s113
      %s114 = sphi 0, %s111
      %s115 = sphi 0, %s114
      %s131 = sphi 0, %s115
    $region4: #{tpu_custom_call.1} parent=1 // loop_header_branch
      %17 = sbr.rel (%p15) target = $region8
    $region5: #{tpu_custom_call.1} parent=1 // loop_body
      %s19 = ssub.s32 %s14, 1
      %s20 = ssub.s32 %s14, 2
      %s27 = sadd.s32 1, %s22
      %p28 = scmp.ge.s32.totalorder %s27, 1
      %s29 = scalar_select %p28, 0, %s27
      %s30 = sadd.s32 1, %s21
      %s31 = scalar_select %p28, %s30, %s21
      %p32 = scmp.ge.s32.totalorder %s31, 2
      %s33 = scalar_select %p32, 0, %s31
      %s34 = ssub.s32 %s21, %s33
      %s35 = ssub.s32 %s22, %s29
      %s36 = sor.u32 %s34, %s35
      %p37 = scmp.eq.s32.totalorder %s36, 0
      %s39 = sadd.s32 %s38, 1
      %s40 = scalar_select %p37, %s38, %s39
      %p43 = pneg %p37
      %p44 = scmp.eq.s32.totalorder %s14, 1
      %p45 = por %p43, %p44
      %p46 = scmp.ne.s32.totalorder %s38, %s41
      %p47 = scmp.eq.s32.totalorder %s14, 0
      %p48 = por %p46, %p47
      %p49 = scmp.ne.s32.totalorder %s38, %s41
      %p50 = scmp.eq.s32.totalorder %s19, 1
      %p51 = por %p49, %p50
      %p52 = scmp.ne.s32.totalorder %s41, %s42
      %p53 = scmp.eq.s32.totalorder %s19, 0
      %p54 = por %p52, %p53
      %p55 = scmp.ne.s32.totalorder %s41, %s42
      %p56 = scmp.eq.s32.totalorder %s20, 1
      %p57 = por %p55, %p56
      %p59 = scmp.ne.s32.totalorder %s42, %s58
      %p60 = scmp.eq.s32.totalorder %s20, 0
      %p61 = por %p59, %p60
      %s63 = sadd.s32 %s62, 1
      %p66 = scmp.eq.s32.totalorder %s14, 1
      %p67 = scmp.ne.s32.totalorder %s62, %s64
      %p68 = scmp.eq.s32.totalorder %s14, 0
      %p69 = por %p67, %p68
      %p70 = scmp.ne.s32.totalorder %s62, %s64
      %p71 = scmp.eq.s32.totalorder %s19, 1
      %p72 = por %p70, %p71
      %p73 = scmp.ne.s32.totalorder %s64, %s65
      %p74 = scmp.eq.s32.totalorder %s19, 0
      %p75 = por %p73, %p74
      %p76 = scmp.ne.s32.totalorder %s64, %s65
      %p77 = scmp.eq.s32.totalorder %s20, 1
      %p78 = por %p76, %p77
      %p80 = scmp.ne.s32.totalorder %s65, %s79
      %p81 = scmp.eq.s32.totalorder %s20, 0
      %p82 = por %p80, %p81
      %s83 = ssub.s32 %s21, %s33
      %p84 = scmp.eq.s32.totalorder %s83, 0
      %s86 = sadd.s32 %s85, 1
      %s87 = scalar_select %p84, %s85, %s86
      %p90 = pneg %p84
      %p91 = scmp.eq.s32.totalorder %s14, 1
      %p92 = por %p90, %p91
      %p93 = scmp.ne.s32.totalorder %s85, %s88
      %p94 = scmp.eq.s32.totalorder %s14, 0
      %p95 = por %p93, %p94
      %p96 = scmp.ne.s32.totalorder %s85, %s88
      %p97 = scmp.eq.s32.totalorder %s19, 1
      %p98 = por %p96, %p97
      %p99 = scmp.ne.s32.totalorder %s88, %s89
      %p100 = scmp.eq.s32.totalorder %s19, 0
      %p101 = por %p99, %p100
      %p102 = scmp.ne.s32.totalorder %s88, %s89
      %p103 = scmp.eq.s32.totalorder %s20, 1
      %p104 = por %p102, %p103
      %p106 = scmp.ne.s32.totalorder %s89, %s105
      %p107 = scmp.eq.s32.totalorder %s20, 0
      %p108 = por %p106, %p107
      %s109 = ssub.s32 %s21, %s33
      %p110 = scmp.eq.s32.totalorder %s109, 0
      %s112 = sadd.s32 %s111, 1
      %s113 = scalar_select %p110, %s111, %s112
      %p116 = pneg %p110
      %p117 = scmp.eq.s32.totalorder %s14, 1
      %p118 = por %p116, %p117
      %p119 = scmp.ne.s32.totalorder %s111, %s114
      %p120 = scmp.eq.s32.totalorder %s14, 0
      %p121 = por %p119, %p120
      %p122 = scmp.ne.s32.totalorder %s111, %s114
      %p123 = scmp.eq.s32.totalorder %s19, 1
      %p124 = por %p122, %p123
      %p125 = scmp.ne.s32.totalorder %s114, %s115
      %p126 = scmp.eq.s32.totalorder %s19, 0
      %p127 = por %p125, %p126
      %p128 = scmp.ne.s32.totalorder %s114, %s115
      %p129 = scmp.eq.s32.totalorder %s20, 1
      %p130 = por %p128, %p129
      %p132 = scmp.ne.s32.totalorder %s115, %s131
      %p133 = scmp.eq.s32.totalorder %s20, 0
      %p134 = por %p132, %p133
      %p135 = scmp.le.s32.totalorder 1, %s14
      %p136 = scmp.lt.s32.totalorder %s14, 3
      %p137 = pnand %p135, %p136
      %p138 = pneg %p137
      // Predicated region
      $region9: #{tpu_custom_call.1} parent=5 // pred_check
        _
      $region10: #{tpu_custom_call.1} parent=5 // pred_check_branch
        %140 = sbr.rel (%p137) target = $region12
      $region11: #{tpu_custom_call.1} parent=5 // pred_region
        %s141 = ssub.s32 %s14, 1
        // Predicated region
        $region13: #{tpu_custom_call.1} parent=11 // pred_check
          %p142 = pneg %p75
        $region14: #{tpu_custom_call.1} parent=11 // pred_check_branch
          %144 = sbr.rel (%p142) target = $region16
        $region15: #{tpu_custom_call.1} parent=11 // pred_region
          %s146 = ssub.s32 128, 128
          %147 = vsyncadd [#allocation5], %s146
          %s149 = sshll.u32 [#allocation4], 4
          %s150 = int_to_ptr.vmem [resolvable:$true] %s149
          %152 = dma.hbm_to_vmem [thread:$0]  %s1, 128, %s150, [#allocation5]
        $region16: #{tpu_custom_call.1} parent=11 // pred_fallthru
          _
      $region12: #{tpu_custom_call.1} parent=5 // pred_fallthru
        _
      %p153 = scmp.lt.s32.totalorder %s14, 2
      // Predicated region
      $region17: #{tpu_custom_call.1} parent=5 // pred_check
        %p154 = pneg %p153
      $region18: #{tpu_custom_call.1} parent=5 // pred_check_branch
        %156 = sbr.rel (%p154) target = $region20
      $region19: #{tpu_custom_call.1} parent=5 // pred_region
        // Predicated region
        $region21: #{tpu_custom_call.1} parent=19 // pred_check
          %p157 = pneg %p48
        $region22: #{tpu_custom_call.1} parent=19 // pred_check_branch
          %159 = sbr.rel (%p157) target = $region24
        $region23: #{tpu_custom_call.1} parent=19 // pred_region
          %s160 = sand.u32 %s38, 1
          %s161 = scalar_lea.sflag [#allocation3], %s160
          %s162 = sand.u32 %s38, 1
          %s163 = smul.addr %s162, 16
          %s164 = scalar_lea.vmem [#allocation2], %s163
          %s165 = smul.u32 2, %s22
          %s167 = ssub.s32 256, 256
          %168 = vsyncadd %s161, %s167
          %s169 = smul.addr %s21, 2
          %s170 = sadd.s32 %s165, %s169
          %s171 = smul.addr %s170, 128
          %s172 = scalar_lea.hbm %s0, %s171
          %s174 = sshll.u32 %s164, 4
          %s175 = int_to_ptr.vmem [resolvable:$true] %s174
          %177 = dma.hbm_to_vmem [thread:$0]  %s172, 256, %s175, %s161
        $region24: #{tpu_custom_call.1} parent=19 // pred_fallthru
          _
      $region20: #{tpu_custom_call.1} parent=5 // pred_fallthru
        _
      %p178 = scmp.le.s32.totalorder 1, %s14
      %p179 = scmp.lt.s32.totalorder %s14, 3
      %p180 = pnand %p178, %p179
      %p181 = pneg %p180
      // Predicated region
      $region25: #{tpu_custom_call.1} parent=5 // pred_check
        _
      $region26: #{tpu_custom_call.1} parent=5 // pred_check_branch
        %183 = sbr.rel (%p180) target = $region28
      $region27: #{tpu_custom_call.1} parent=5 // pred_region
        %s184 = ssub.s32 %s14, 1
        %s185 = sand.u32 %s41, 1
        %s186 = scalar_lea.sflag [#allocation3], %s185
        %s187 = sand.u32 %s41, 1
        %s188 = smul.addr %s187, 16
        %s189 = scalar_lea.vmem [#allocation2], %s188
        // Predicated region
        $region29: #{tpu_custom_call.1} parent=27 // pred_check
          %p190 = pneg %p54
        $region30: #{tpu_custom_call.1} parent=27 // pred_check_branch
          %192 = sbr.rel (%p190) target = $region32
        $region31: #{tpu_custom_call.1} parent=27 // pred_region
          %193 = dma.done %s186, 256
        $region32: #{tpu_custom_call.1} parent=27 // pred_fallthru
          _
        // Predicated region
        $region33: #{tpu_custom_call.1} parent=27 // pred_check
          %p194 = pneg %p75
        $region34: #{tpu_custom_call.1} parent=27 // pred_check_branch
          %196 = sbr.rel (%p194) target = $region36
        $region35: #{tpu_custom_call.1} parent=27 // pred_region
          %197 = dma.done [#allocation5], 128
        $region36: #{tpu_custom_call.1} parent=27 // pred_fallthru
          _
        %s198 = sand.u32 %s41, 1
        %s199 = scalar_lea.sflag [#allocation3], %s198
        %s200 = sand.u32 %s41, 1
        %s201 = smul.addr %s200, 16
        %s202 = scalar_lea.vmem [#allocation2], %s201
        %p203 = pneg %p54
        %p204 = pneg %p51
        %p205 = pneg %p75
        %p206 = pneg %p72
        %p207 = pneg %p101
        %p208 = pneg %p98
        %p209 = scmp.lt.s32.totalorder %s23, 1
        %s210 = scalar_select %p209, %s23, 1
        %s211 = smul.addr %s210, 8
        %s212 = scalar_lea.vmem %s2, %s211
        %p213 = pneg %p127
        %p214 = pneg %p124
        %p215 = scmp.lt.s32.totalorder %s23, 1
        %s216 = scalar_select %p215, %s23, 1
        %s217 = smul.addr %s216, 8
        %s218 = scalar_lea.vmem %s3, %s217
        %s219 = smul.u32 2, %s24
        %p220 = scmp.lt.s32.totalorder %s23, 1
        %s221 = scalar_select %p220, %s23, 1
        %s222 = smul.addr %s221, 8
        %s223 = scalar_lea.vmem %s2, %s222
        %p224 = scmp.lt.s32.totalorder %s23, 1
        %s225 = scalar_select %p224, %s23, 1
        %s226 = smul.addr %s225, 8
        %s227 = scalar_lea.vmem %s3, %s226
        %p228 = scmp.eq.s32.totalorder %s24, 0
        // Predicated region
        $region37: #{tpu_custom_call.1} parent=27 // pred_check
          %p229 = pneg %p228
        $region38: #{tpu_custom_call.1} parent=27 // pred_check_branch
          %231 = sbr.rel (%p229) target = $region40
        $region39: #{tpu_custom_call.1} parent=27 // pred_region
          %vm232 = vcmask 7168
          %233 = vst.msk [vmem:[%s223] sm:$0xff] %vm232, 0.0
          %234 = vst.msk [vmem:[%s227] sm:$0xff] %vm232, 0.0
        $region40: #{tpu_custom_call.1} parent=27 // pred_fallthru
          _
        %v235 = vld [vmem:[#allocation4] sm:$0xff]
        %v236 = vld [vmem:[%s189] sm:$0xff]
        %v237 = vld [vmem:[%s189 + $0x8] sm:$0xff]
        %vm238 = vcmask 64512
        %v240 = vsel %vm238, %v235, 0
        %242 = vmatprep.subr.mxu0 0.0
        %243 = vmatpush1.msra.mxu0 0.0
        %244 = vmatprep.subr.mxu0 0.0
        %245 = vmatpush1.msra.mxu0 0.0
        %246 = vmatprep.subr.mxu0 0.0
        %247 = vmatpush1.msra.mxu0 0.0
        %248 = vmatprep.subr.mxu0 0.0
        %249 = vmatpush1.msra.mxu0 0.0
        %250 = vmatprep.subr.mxu0 0.0
        %251 = vmatpush1.msra.mxu0 0.0
        %252 = vmatprep.subr.mxu0 0.0
        %253 = vmatpush1.msra.mxu0 0.0
        %254 = vmatprep.subr.mxu0 0.0
        %255 = vmatpush1.msra.mxu0 0.0
        %256 = vmatprep.subr.mxu0 0.0
        %257 = vmatpush1.msra.mxu0 0.0
        %258 = vmatprep.subr.mxu0 0.0
        %259 = vmatpush1.msra.mxu0 0.0
        %260 = vmatprep.subr.mxu0 0.0
        %261 = vmatpush1.msra.mxu0 0.0
        %262 = vmatprep.subr.mxu0 0.0
        %263 = vmatpush1.msra.mxu0 0.0
        %264 = vmatprep.subr.mxu0 0.0
        %265 = vmatpush1.msra.mxu0 0.0
        %266 = vmatprep.subr.mxu0 0.0
        %267 = vmatpush1.msra.mxu0 0.0
        %268 = vmatprep.subr.mxu0 0.0
        %269 = vmatpush1.msra.mxu0 0.0
        %270 = vmatprep.subr.mxu0 0.0
        %271 = vmatpush1.msra.mxu0 0.0
        %272 = vmatprep.subr.mxu0 %v237
        %273 = vmatpush1.msra.mxu0 %v236
        %274 = vmatprep.subr.mxu0 0.0
        %275 = vmatpush2.msra.mxu0 0.0
        %276 = vmatprep.subr.mxu0 0.0
        %277 = vmatpush2.msra.mxu0 0.0
        %278 = vmatprep.subr.mxu0 0.0
        %279 = vmatpush2.msra.mxu0 0.0
        %280 = vmatprep.subr.mxu0 0.0
        %281 = vmatpush2.msra.mxu0 0.0
        %282 = vmatprep.subr.mxu0 0.0
        %283 = vmatpush2.msra.mxu0 0.0
        %284 = vmatprep.subr.mxu0 0.0
        %285 = vmatpush2.msra.mxu0 0.0
        %286 = vmatprep.subr.mxu0 0.0
        %287 = vmatpush2.msra.mxu0 0.0
        %288 = vmatprep.subr.mxu0 0.0
        %289 = vmatpush2.msra.mxu0 0.0
        %290 = vmatprep.subr.mxu0 0.0
        %291 = vmatpush2.msra.mxu0 0.0
        %292 = vmatprep.subr.mxu0 0.0
        %293 = vmatpush2.msra.mxu0 0.0
        %294 = vmatprep.subr.mxu0 0.0
        %295 = vmatpush2.msra.mxu0 0.0
        %296 = vmatprep.subr.mxu0 0.0
        %297 = vmatpush2.msra.mxu0 0.0
        %298 = vmatprep.subr.mxu0 0.0
        %299 = vmatpush2.msra.mxu0 0.0
        %300 = vmatprep.subr.mxu0 0.0
        %301 = vmatpush2.msra.mxu0 0.0
        %302 = vmatprep.subr.mxu0 0.0
        %303 = vmatpush2.msra.mxu0 0.0
        %304 = vmatprep.subr.mxu0 0.0
        %305 = vmatpush2.msra.mxu0 0.0
        %306 = vmatprep.mubr.f32.mxu0 0.0
        %307 = vmatmul.mubr.f32.gmra.mxu0 %v240
        %v308 = vpop.f32.mrf.mxu0
        %v309 = vadd.f32 0.0, %v308
        %v310 = vpop.f32.mrf.mxu0
        %v311 = vadd.f32 0.0, %v310
        %312 = vdwg.mxu0
        %v313 = vld [vmem:[%s223] sm:$0xff]
        %v314 = vadd.f32 %v309, %v311
        %315 = vadd.xlane.f32.xlu0 %v314
        %v316 = vpop.xlane.xlu0 %315
        %v317 = vadd.f32 %v313, %v316
        %vm318 = vcmask 7168
        %319 = vst.msk [vmem:[%s223] sm:$0xff] %vm318, %v317
        %v320 = vld [vmem:[%s227] sm:$0xff]
        %v321 = vmul.f32 %v309, %v309
        %v322 = vmul.f32 %v311, %v311
        %v323 = vadd.f32 %v321, %v322
        %324 = vadd.xlane.f32.xlu0 %v323
        %v325 = vpop.xlane.xlu0 %324
        %v326 = vadd.f32 %v320, %v325
        %327 = vst.msk [vmem:[%s227] sm:$0xff] %vm318, %v326
        %p328 = scmp.lt.s32.totalorder %s23, 1
        %s329 = scalar_select %p328, %s23, 1
        %s330 = smul.addr %s329, 8
        %s331 = scalar_lea.vmem %s2, %s330
        %p332 = scmp.lt.s32.totalorder %s23, 1
        %s333 = scalar_select %p332, %s23, 1
        %s334 = smul.addr %s333, 8
        %s335 = scalar_lea.vmem %s3, %s334
        // Predicated region
        $region41: #{tpu_custom_call.1} parent=27 // pred_check
          %p336 = pneg %p98
        $region42: #{tpu_custom_call.1} parent=27 // pred_check_branch
          %338 = sbr.rel (%p336) target = $region44
        $region43: #{tpu_custom_call.1} parent=27 // pred_region
          _
        $region44: #{tpu_custom_call.1} parent=27 // pred_fallthru
          _
        // Predicated region
        $region45: #{tpu_custom_call.1} parent=27 // pred_check
          %p339 = pneg %p124
        $region46: #{tpu_custom_call.1} parent=27 // pred_check_branch
          %341 = sbr.rel (%p339) target = $region48
        $region47: #{tpu_custom_call.1} parent=27 // pred_region
          _
        $region48: #{tpu_custom_call.1} parent=27 // pred_fallthru
          _
      $region28: #{tpu_custom_call.1} parent=5 // pred_fallthru
        _
      %p342 = scmp.le.s32.totalorder 2, %s14
      // Predicated region
      $region49: #{tpu_custom_call.1} parent=5 // pred_check
        %p343 = pneg %p342
      $region50: #{tpu_custom_call.1} parent=5 // pred_check_branch
        %345 = sbr.rel (%p343) target = $region52
      $region51: #{tpu_custom_call.1} parent=5 // pred_region
        %s346 = ssub.s32 %s14, 2
        // Predicated region
        $region53: #{tpu_custom_call.1} parent=51 // pred_check
          %p347 = pneg %p104
        $region54: #{tpu_custom_call.1} parent=51 // pred_check_branch
          %349 = sbr.rel (%p347) target = $region56
        $region55: #{tpu_custom_call.1} parent=51 // pred_region
          %p350 = scmp.lt.s32.totalorder %s25, 1
          %s351 = scalar_select %p350, %s25, 1
          %s352 = smul.addr %s351, 8
          %s353 = scalar_lea.vmem %s2, %s352
        $region56: #{tpu_custom_call.1} parent=51 // pred_fallthru
          _
        // Predicated region
        $region57: #{tpu_custom_call.1} parent=51 // pred_check
          %p354 = pneg %p130
        $region58: #{tpu_custom_call.1} parent=51 // pred_check_branch
          %356 = sbr.rel (%p354) target = $region60
        $region59: #{tpu_custom_call.1} parent=51 // pred_region
          %p357 = scmp.lt.s32.totalorder %s25, 1
          %s358 = scalar_select %p357, %s25, 1
          %s359 = smul.addr %s358, 8
          %s360 = scalar_lea.vmem %s3, %s359
        $region60: #{tpu_custom_call.1} parent=51 // pred_fallthru
          _
      $region52: #{tpu_custom_call.1} parent=5 // pred_fallthru
        _
    $region6: #{tpu_custom_call.1} parent=1 // loop_footer
      %s18 = sadd.s32 1, %s14
    $region7: #{tpu_custom_call.1} parent=1 // loop_footer_branch
      %13 = sbr.rel target = $region3
    $region8: #{tpu_custom_call.1} parent=1 // loop_exit
      _
    %361 = vsyncpa [#allocation3], 1
    %s362 = scalar_lea.sflag [#allocation3], 1
    %363 = vsyncpa %s362, 1
    %364 = vsyncpa [#allocation5], 1

</llo_original>
